<compile_context>
chip_gen: v7x
topology: tpu7x:2x2x1
jax: 0.10.0
libtpu: 0.0.40
codegen_flags: <defaults>
</compile_context>

<pallas_src>
import functools
import math

import jax
import jax.numpy as jnp
from jax.experimental import pallas as pl
from jax.experimental.pallas import tpu as pltpu


def _round_up(x, m):
    return (x + m - 1) // m * m


def _arcface_kernel(feat_ref, w_ref, invw_ref, label_ref, out_ref, *,
                    s, cos_m, sin_m):
    """Computes one class tile out[:, c*TN:(c+1)*TN] of the arcface logits.

    feat_ref : [B, D]   pre-normalized (unit L2 * s) features, compute dtype
    w_ref    : [D, TN]  raw weight tile, K-major, compute dtype
    invw_ref : [1, TN]  f32 per-class inverse weight norms (0 on padded cols)
    label_ref: [B, 1]   int32 class ids
    out_ref  : [B, TN]  arcface logits tile
    """
    eps = 1e-4          # matches the PyTorch module's clamp epsilon
    inv_s = 1.0 / s
    b, tn = out_ref.shape

    # --- cosine logits: compute-dtype MXU operands, f32 accumulation -------
    # K-major weights => standard contraction (no in-kernel transpose); the
    # per-class norm is applied to the small [B, TN] result, not the weights.
    fc7 = jnp.dot(feat_ref[...], w_ref[...],
                  preferred_element_type=jnp.float32) * invw_ref[...]

    # --- one-hot from GLOBAL class ids for this tile ------------------------
    col0 = pl.program_id(0) * tn
    cls_ids = jax.lax.broadcasted_iota(jnp.int32, (b, tn), 1) + col0
    one_hot = (cls_ids == label_ref[...]).astype(jnp.float32)       # [B, TN]

    # --- arcface margin (tile-local: one_hot == 0 outside the target tile) --
    zy = jnp.sum(fc7 * one_hot, axis=-1, keepdims=True)             # [B, 1]
    cos_theta = jnp.clip(zy * inv_s, -1.0 + eps, 1.0 - eps)
    # cos(theta + m) = cos*cos_m - sin*sin_m with sin >= 0, valid because
    # cos_theta is clipped into (-1+eps, 1-eps): identical to cos(acos(.)+m).
    sin_theta = jnp.sqrt(jnp.maximum(1.0 - cos_theta * cos_theta, 0.0))
    new_zy = (cos_theta * cos_m - sin_theta * sin_m) * s
    diff = new_zy - zy                                              # [B, 1]

    out_ref[...] = (fc7 + diff * one_hot).astype(out_ref.dtype)


def arcface_loss_forward(feat, weights, label, *, s=8.0, m=0.2,
                         block_classes=1024,
                         compute_dtype=jnp.bfloat16,
                         out_dtype=jnp.float32):
    """Pallas implementation of Arcface_loss.forward.

    feat:    [B, feat_dim] float
    weights: [num_classes, feat_dim] float
    label:   [B] integer class ids
    returns: [B, num_classes] logits in `out_dtype`
    """
    B, D = feat.shape
    C, Dw = weights.shape
    assert D == Dw, "feat_dim mismatch"

    norm_eps = 1e-12    # guards rsqrt against zero rows / padded columns

    # Hardware-friendly padding: lanes (last dim) multiples of 128, batch a
    # multiple of 8 sublanes, class tiles multiples of 128 so output stores
    # are lane-dense (unmasked vst).
    B_pad = _round_up(max(B, 8), 8)
    D_pad = _round_up(D, 128)
    C128 = _round_up(C, 128)
    tn = min(_round_up(block_classes, 128), C128)
    # Keep >= 2 class tiles when possible so the v7x megacore can shard the
    # "parallel" grid axis across both TensorCores.
    if C128 // tn < 2 and C128 >= 256:
        tn = _round_up(C128 // 2, 128)
    C_pad = _round_up(C128, tn)

    # --- hoisted feature L2 normalization (fused with pad/cast by XLA) ------
    feat_f32 = feat.astype(jnp.float32)
    feat_sumsq = jnp.sum(feat_f32 * feat_f32, axis=-1, keepdims=True)
    feat_scale = jax.lax.rsqrt(jnp.maximum(feat_sumsq, norm_eps)) * s
    feat_p = jnp.zeros((B_pad, D_pad), compute_dtype).at[:B, :D].set(
        (feat_f32 * feat_scale).astype(compute_dtype))

    # --- hoisted per-class inverse weight norms (f32, lane-major row) -------
    w_f32 = weights.astype(jnp.float32)
    w_sumsq = jnp.sum(w_f32 * w_f32, axis=-1)                       # [C]
    inv_wnorm = jax.lax.rsqrt(jnp.maximum(w_sumsq, norm_eps))       # [C]
    invw_p = jnp.zeros((1, C_pad), jnp.float32).at[0, :C].set(inv_wnorm)

    # K-major weight layout ([D_pad, C_pad]) so the streamed tile is consumed
    # with a standard contraction (no per-tile vxpose); shipped in the compute
    # dtype (bf16) to halve HBM traffic vs f32.
    # TODO(synk): for bandwidth-bound shapes, quantize this stream to int8
    # (v5e/v6e) or fp8 e4m3 (v7x) with per-class scales folded into inv_wnorm.
    w_p = jnp.zeros((D_pad, C_pad), compute_dtype).at[:D, :C].set(
        w_f32.T.astype(compute_dtype))

    label_p = jnp.zeros((B_pad, 1), jnp.int32).at[:B, 0].set(
        label.astype(jnp.int32))

    kernel = functools.partial(
        _arcface_kernel, s=float(s),
        cos_m=float(math.cos(m)), sin_m=float(math.sin(m)))

    # Explicit VMEM budget: double-buffered streamed tiles + pinned inputs,
    # with headroom; capped at 64 MiB so it stays within a v7x TensorCore.
    itm = jnp.dtype(compute_dtype).itemsize
    feat_bytes = B_pad * D_pad * itm
    label_bytes = B_pad * 128 * 4            # lane-padded int32 block
    w_tile_bytes = D_pad * tn * itm
    invw_bytes = 8 * tn * 4                  # sublane-padded f32 row
    out_tile_bytes = B_pad * tn * jnp.dtype(out_dtype).itemsize
    vmem_bytes = 2 * (feat_bytes + label_bytes + w_tile_bytes
                      + invw_bytes + out_tile_bytes)
    vmem_limit = int(min(max(vmem_bytes + (4 << 20), 16 << 20), 64 << 20))

    def build(pinned_mode):
        def pinned(shape, index_map):
            if pinned_mode is None:
                return pl.BlockSpec(shape, index_map)
            return pl.BlockSpec(shape, index_map, pipeline_mode=pinned_mode)

        return pl.pallas_call(
            kernel,
            out_shape=jax.ShapeDtypeStruct((B_pad, C_pad), out_dtype),
            grid=(C_pad // tn,),
            in_specs=[
                pinned((B_pad, D_pad), lambda c: (0, 0)),        # feat (pinned)
                pl.BlockSpec((D_pad, tn), lambda c: (0, c)),     # weight tile
                pl.BlockSpec((1, tn), lambda c: (0, c)),         # inv w-norms
                pinned((B_pad, 1), lambda c: (0, 0)),            # labels
            ],
            out_specs=pl.BlockSpec((B_pad, tn), lambda c: (0, c)),
            compiler_params=pltpu.CompilerParams(
                dimension_semantics=("parallel",),
                vmem_limit_bytes=vmem_limit),
        )

    # TODO(synk): for very large B (>= ~1024), add a batch grid axis
    # (grid=(C_tiles, B_tiles), weight index_map depending only on c) to bound
    # the pinned-feat / output-tile VMEM footprint independently of B.
    try:
        out = build(pl.Buffered(1))(feat_p, w_p, invw_p, label_p)
    except Exception:
        # Defensive fallback if this jax version rejects single-buffering of
        # grid-invariant inputs via pipeline_mode.
        out = build(None)(feat_p, w_p, invw_p, label_p)

    return out[:B, :C]


def _reference(feat, weights, label, s=8.0, m=0.2):
    """Pure-JAX f32 reference mirroring the PyTorch module exactly."""
    eps = 1e-4
    C = weights.shape[0]
    feat = feat.astype(jnp.float32)
    weights = weights.astype(jnp.float32)
    norms = jnp.linalg.norm(feat, axis=-1, keepdims=True)
    feat_l2 = feat / norms * s
    norms_w = jnp.linalg.norm(weights, axis=-1, keepdims=True)
    w_l2 = weights / norms_w
    fc7 = feat_l2 @ w_l2.T
    one_hot = jax.nn.one_hot(label, C, dtype=fc7.dtype)
    zy = jnp.sum(fc7 * one_hot, axis=-1)
    cos_theta = jnp.clip(zy / s, -1.0 + eps, 1.0 - eps)
    theta = jnp.arccos(cos_theta) + m
    new_zy = jnp.cos(theta) * s
    diff = (new_zy - zy)[:, None]
    return fc7 + diff * one_hot


if __name__ == "__main__":
    s, m = 8.0, 0.2
    key = jax.random.PRNGKey(0)
    k1, k2, k3, k4, k5, k6 = jax.random.split(key, 6)

    # Tolerances are loose because the kernel feeds bf16 operands to the MXU
    # (f32 accumulation), as recommended for v5e/v6e/v7x throughput.
    ATOL, RTOL = 1e-1, 5e-2

    # --- Config 1: module-like toy shapes (batch=8, feat_dim=32, classes=16).
    B, D, C = 8, 32, 16
    feat = jax.random.normal(k1, (B, D), dtype=jnp.float32)
    weights = jax.random.normal(k2, (C, D), dtype=jnp.float32)   # randn init
    label = jax.random.randint(k3, (B,), 0, C, dtype=jnp.int32)
    ref = _reference(feat, weights, label, s=s, m=m)

    out = jax.block_until_ready(arcface_loss_forward(feat, weights, label,
                                                     s=s, m=m))
    assert out.shape == (B, C)
    assert jnp.allclose(out, ref, atol=ATOL, rtol=RTOL), (
        f"bf16 path: max abs err {jnp.max(jnp.abs(out - ref))}")

    # Also exercise the f32-operand path (test-only; bf16 is the prod path).
    out_f32 = jax.block_until_ready(arcface_loss_forward(
        feat, weights, label, s=s, m=m, compute_dtype=jnp.float32))
    assert jnp.allclose(out_f32, ref, atol=ATOL, rtol=RTOL), (
        f"f32 path: max abs err {jnp.max(jnp.abs(out_f32 - ref))}")

    # --- Config 2: class dim spans multiple tiles to exercise the
    # global-class-id one-hot / tile-local margin logic.
    B2, F2, C2 = 8, 32, 300
    feat2 = jax.random.normal(k4, (B2, F2), dtype=jnp.float32)
    weights2 = jax.random.normal(k5, (C2, F2), dtype=jnp.float32)
    label2 = jax.random.randint(k6, (B2,), 0, C2, dtype=jnp.int32)
    ref2 = _reference(feat2, weights2, label2, s=s, m=m)

    # 3 tiles of 128 classes.
    out2 = jax.block_until_ready(arcface_loss_forward(
        feat2, weights2, label2, s=s, m=m, block_classes=128))
    assert out2.shape == (B2, C2)
    assert jnp.allclose(out2, ref2, atol=ATOL, rtol=RTOL), (
        f"multi-tile: max abs err {jnp.max(jnp.abs(out2 - ref2))}")

    # Default tile size -> megacore-balance path splits 384 classes into
    # 2 tiles of 256.
    out2b = jax.block_until_ready(arcface_loss_forward(
        feat2, weights2, label2, s=s, m=m))
    assert jnp.allclose(out2b, ref2, atol=ATOL, rtol=RTOL), (
        f"2-tile split: max abs err {jnp.max(jnp.abs(out2b - ref2))}")

    print("KERNEL_OK")
</pallas_src>

<mosaic_0001>
module attributes {stable_mosaic.version = 11 : i64} {
  func.func @_arcface_kernel(%arg0: i32, %arg1: memref<8x128xbf16, #tpu.memory_space<vmem>>, %arg2: memref<128x128xbf16, #tpu.memory_space<vmem>>, %arg3: memref<1x128xf32, #tpu.memory_space<vmem>>, %arg4: memref<8x1xi32, #tpu.memory_space<vmem>>, %arg5: memref<8x128xf32, #tpu.memory_space<vmem>>) attributes {dimension_semantics = [#tpu.dimension_semantics<parallel>], iteration_bounds = array<i64: 1>, scalar_prefetch = 0 : i64, scratch_operands = 0 : i64, tpu.core_type = #tpu.core_type<tc>, window_params = [{pipeline_mode = #tpu.pipeline_mode<synchronous>, transform_indices = @transform_0, window_bounds = array<i64: 8, 128>}, {transform_indices = @transform_1, window_bounds = array<i64: 128, 128>}, {transform_indices = @transform_2, window_bounds = array<i64: 1, 128>}, {pipeline_mode = #tpu.pipeline_mode<synchronous>, transform_indices = @transform_3, window_bounds = array<i64: 8, 1>}, {transform_indices = @transform_4, window_bounds = array<i64: 8, 128>}]} {
    %c0 = arith.constant 0 : index
    %c0_0 = arith.constant 0 : index
    %0 = vector.load %arg1[%c0, %c0_0] : memref<8x128xbf16, #tpu.memory_space<vmem>>, vector<8x128xbf16>
    %c0_1 = arith.constant 0 : index
    %c0_2 = arith.constant 0 : index
    %1 = vector.load %arg2[%c0_1, %c0_2] : memref<128x128xbf16, #tpu.memory_space<vmem>>, vector<128x128xbf16>
    %cst = arith.constant dense<0.000000e+00> : vector<8x128xf32>
    %2 = tpu.matmul %0, %1, %cst {dimension_numbers = #tpu.dot_dimension_numbers<[1], [0], [0], [1], [0, 0, 1, 1], [], []>} : vector<8x128xbf16>, vector<128x128xbf16>, vector<8x128xf32> -> vector<8x128xf32>
    %c0_3 = arith.constant 0 : index
    %c0_4 = arith.constant 0 : index
    %3 = vector.load %arg3[%c0_3, %c0_4] : memref<1x128xf32, #tpu.memory_space<vmem>>, vector<1x128xf32>
    %4 = vector.broadcast %3 : vector<1x128xf32> to vector<8x128xf32>
    %5 = arith.mulf %2, %4 : vector<8x128xf32>
    %c128_i32 = arith.constant 128 : i32
    %6 = arith.muli %arg0, %c128_i32 : i32
    %7 = tpu.iota {dimensions = array<i32: 1>} : vector<8x128xi32>
    %8 = vector.broadcast %6 : i32 to vector<8x128xi32>
    %9 = arith.addi %7, %8 : vector<8x128xi32>
    %c0_5 = arith.constant 0 : index
    %c0_6 = arith.constant 0 : index
    %10 = vector.load %arg4[%c0_5, %c0_6] : memref<8x1xi32, #tpu.memory_space<vmem>>, vector<8x1xi32>
    %11 = vector.broadcast %10 : vector<8x1xi32> to vector<8x128xi32>
    %12 = arith.cmpi eq, %9, %11 : vector<8x128xi32>
    %13 = arith.extui %12 : vector<8x128xi1> to vector<8x128xi32>
    %14 = arith.sitofp %13 : vector<8x128xi32> to vector<8x128xf32>
    %15 = arith.mulf %5, %14 : vector<8x128xf32>
    %cst_7 = arith.constant dense<0.000000e+00> : vector<8xf32>
    %16 = vector.multi_reduction <add>, %15, %cst_7 [1] : vector<8x128xf32> to vector<8xf32>
    %17 = vector.shape_cast %16 : vector<8xf32> to vector<8x1xf32>
    %cst_8 = arith.constant 1.250000e-01 : f32
    %18 = vector.broadcast %cst_8 : f32 to vector<8x1xf32>
    %19 = arith.mulf %17, %18 : vector<8x1xf32>
    %cst_9 = arith.constant -0.999899983 : f32
    %cst_10 = arith.constant 0.999899983 : f32
    %20 = vector.broadcast %cst_9 : f32 to vector<8x1xf32>
    %21 = arith.maximumf %20, %19 : vector<8x1xf32>
    %22 = vector.broadcast %cst_10 : f32 to vector<8x1xf32>
    %23 = arith.minimumf %22, %21 : vector<8x1xf32>
    %24 = arith.mulf %23, %23 : vector<8x1xf32>
    %cst_11 = arith.constant 1.000000e+00 : f32
    %25 = vector.broadcast %cst_11 : f32 to vector<8x1xf32>
    %26 = arith.subf %25, %24 : vector<8x1xf32>
    %cst_12 = arith.constant 0.000000e+00 : f32
    %27 = vector.broadcast %cst_12 : f32 to vector<8x1xf32>
    %28 = arith.maximumf %26, %27 : vector<8x1xf32>
    %29 = math.sqrt %28 : vector<8x1xf32>
    %cst_13 = arith.constant 0.980066597 : f32
    %30 = vector.broadcast %cst_13 : f32 to vector<8x1xf32>
    %31 = arith.mulf %23, %30 : vector<8x1xf32>
    %cst_14 = arith.constant 0.198669329 : f32
    %32 = vector.broadcast %cst_14 : f32 to vector<8x1xf32>
    %33 = arith.mulf %29, %32 : vector<8x1xf32>
    %34 = arith.subf %31, %33 : vector<8x1xf32>
    %cst_15 = arith.constant 8.000000e+00 : f32
    %35 = vector.broadcast %cst_15 : f32 to vector<8x1xf32>
    %36 = arith.mulf %34, %35 : vector<8x1xf32>
    %37 = arith.subf %36, %17 : vector<8x1xf32>
    %38 = vector.broadcast %37 : vector<8x1xf32> to vector<8x128xf32>
    %39 = arith.mulf %38, %14 : vector<8x128xf32>
    %40 = arith.addf %5, %39 : vector<8x128xf32>
    %c0_16 = arith.constant 0 : index
    %c0_17 = arith.constant 0 : index
    %41 = vector.load %arg5[%c0_16, %c0_17] : memref<8x128xf32, #tpu.memory_space<vmem>>, vector<8x128xf32>
    tpu.vector_store %arg5[%c0_16, %c0_17], %40 {strides = array<i32>} : memref<8x128xf32, #tpu.memory_space<vmem>>, vector<8x128xf32>,
    return
  }
  func.func @transform_0(%arg0: i32) -> (i32, i32) {
    %c0_i32 = arith.constant 0 : i32
    %c0_i32_0 = arith.constant 0 : i32
    %c0_i32_1 = arith.constant 0 : i32
    return %c0_i32, %c0_i32_0 : i32, i32
  }
  func.func @transform_1(%arg0: i32) -> (i32, i32) {
    %c0_i32 = arith.constant 0 : i32
    %c0_i32_0 = arith.constant 0 : i32
    return %c0_i32, %arg0 : i32, i32
  }
  func.func @transform_2(%arg0: i32) -> (i32, i32) {
    %c0_i32 = arith.constant 0 : i32
    %c0_i32_0 = arith.constant 0 : i32
    return %c0_i32, %arg0 : i32, i32
  }
  func.func @transform_3(%arg0: i32) -> (i32, i32) {
    %c0_i32 = arith.constant 0 : i32
    %c0_i32_0 = arith.constant 0 : i32
    %c0_i32_1 = arith.constant 0 : i32
    return %c0_i32, %c0_i32_0 : i32, i32
  }
  func.func @transform_4(%arg0: i32) -> (i32, i32) {
    %c0_i32 = arith.constant 0 : i32
    %c0_i32_0 = arith.constant 0 : i32
    return %c0_i32, %arg0 : i32, i32
  }
}

module attributes {stable_mosaic.version = 11 : i64} {
  func.func @_arcface_kernel(%arg0: i32, %arg1: memref<8x128xbf16, #tpu.memory_space<vmem>>, %arg2: memref<128x128xbf16, #tpu.memory_space<vmem>>, %arg3: memref<1x128xf32, #tpu.memory_space<vmem>>, %arg4: memref<8x1xi32, #tpu.memory_space<vmem>>, %arg5: memref<8x128xf32, #tpu.memory_space<vmem>>) attributes {dimension_semantics = [#tpu.dimension_semantics<parallel>], iteration_bounds = array<i64: 1>, scalar_prefetch = 0 : i64, scratch_operands = 0 : i64, tpu.core_type = #tpu.core_type<tc>, window_params = [{pipeline_mode = #tpu.pipeline_mode<synchronous>, transform_indices = @transform_0, window_bounds = array<i64: 8, 128>}, {transform_indices = @transform_1, window_bounds = array<i64: 128, 128>}, {transform_indices = @transform_2, window_bounds = array<i64: 1, 128>}, {pipeline_mode = #tpu.pipeline_mode<synchronous>, transform_indices = @transform_3, window_bounds = array<i64: 8, 1>}, {transform_indices = @transform_4, window_bounds = array<i64: 8, 128>}]} {
    %c0 = arith.constant 0 : index
    %c0_0 = arith.constant 0 : index
    %0 = vector.load %arg1[%c0, %c0_0] : memref<8x128xbf16, #tpu.memory_space<vmem>>, vector<8x128xbf16>
    %c0_1 = arith.constant 0 : index
    %c0_2 = arith.constant 0 : index
    %1 = vector.load %arg2[%c0_1, %c0_2] : memref<128x128xbf16, #tpu.memory_space<vmem>>, vector<128x128xbf16>
    %cst = arith.constant dense<0.000000e+00> : vector<8x128xf32>
    %2 = tpu.matmul %0, %1, %cst {dimension_numbers = #tpu.dot_dimension_numbers<[1], [0], [0], [1], [0, 0, 1, 1], [], []>} : vector<8x128xbf16>, vector<128x128xbf16>, vector<8x128xf32> -> vector<8x128xf32>
    %c0_3 = arith.constant 0 : index
    %c0_4 = arith.constant 0 : index
    %3 = vector.load %arg3[%c0_3, %c0_4] : memref<1x128xf32, #tpu.memory_space<vmem>>, vector<1x128xf32>
    %4 = vector.broadcast %3 : vector<1x128xf32> to vector<8x128xf32>
    %5 = arith.mulf %2, %4 : vector<8x128xf32>
    %c128_i32 = arith.constant 128 : i32
    %6 = arith.muli %arg0, %c128_i32 : i32
    %7 = tpu.iota {dimensions = array<i32: 1>} : vector<8x128xi32>
    %8 = vector.broadcast %6 : i32 to vector<8x128xi32>
    %9 = arith.addi %7, %8 : vector<8x128xi32>
    %c0_5 = arith.constant 0 : index
    %c0_6 = arith.constant 0 : index
    %10 = vector.load %arg4[%c0_5, %c0_6] : memref<8x1xi32, #tpu.memory_space<vmem>>, vector<8x1xi32>
    %11 = vector.broadcast %10 : vector<8x1xi32> to vector<8x128xi32>
    %12 = arith.cmpi eq, %9, %11 : vector<8x128xi32>
    %13 = arith.extui %12 : vector<8x128xi1> to vector<8x128xi32>
    %14 = arith.sitofp %13 : vector<8x128xi32> to vector<8x128xf32>
    %15 = arith.mulf %5, %14 : vector<8x128xf32>
    %cst_7 = arith.constant dense<0.000000e+00> : vector<8xf32>
    %16 = vector.multi_reduction <add>, %15, %cst_7 [1] : vector<8x128xf32> to vector<8xf32>
    %17 = vector.shape_cast %16 : vector<8xf32> to vector<8x1xf32>
    %cst_8 = arith.constant 1.250000e-01 : f32
    %18 = vector.broadcast %cst_8 : f32 to vector<8x1xf32>
    %19 = arith.mulf %17, %18 : vector<8x1xf32>
    %cst_9 = arith.constant -0.999899983 : f32
    %cst_10 = arith.constant 0.999899983 : f32
    %20 = vector.broadcast %cst_9 : f32 to vector<8x1xf32>
    %21 = arith.maximumf %20, %19 : vector<8x1xf32>
    %22 = vector.broadcast %cst_10 : f32 to vector<8x1xf32>
    %23 = arith.minimumf %22, %21 : vector<8x1xf32>
    %24 = arith.mulf %23, %23 : vector<8x1xf32>
    %cst_11 = arith.constant 1.000000e+00 : f32
    %25 = vector.broadcast %cst_11 : f32 to vector<8x1xf32>
    %26 = arith.subf %25, %24 : vector<8x1xf32>
    %cst_12 = arith.constant 0.000000e+00 : f32
    %27 = vector.broadcast %cst_12 : f32 to vector<8x1xf32>
    %28 = arith.maximumf %26, %27 : vector<8x1xf32>
    %29 = math.sqrt %28 : vector<8x1xf32>
    %cst_13 = arith.constant 0.980066597 : f32
    %30 = vector.broadcast %cst_13 : f32 to vector<8x1xf32>
    %31 = arith.mulf %23, %30 : vector<8x1xf32>
    %cst_14 = arith.constant 0.198669329 : f32
    %32 = vector.broadcast %cst_14 : f32 to vector<8x1xf32>
    %33 = arith.mulf %29, %32 : vector<8x1xf32>
    %34 = arith.subf %31, %33 : vector<8x1xf32>
    %cst_15 = arith.constant 8.000000e+00 : f32
    %35 = vector.broadcast %cst_15 : f32 to vector<8x1xf32>
    %36 = arith.mulf %34, %35 : vector<8x1xf32>
    %37 = arith.subf %36, %17 : vector<8x1xf32>
    %38 = vector.broadcast %37 : vector<8x1xf32> to vector<8x128xf32>
    %39 = arith.mulf %38, %14 : vector<8x128xf32>
    %40 = arith.addf %5, %39 : vector<8x128xf32>
    %c0_16 = arith.constant 0 : index
    %c0_17 = arith.constant 0 : index
    %41 = vector.load %arg5[%c0_16, %c0_17] : memref<8x128xf32, #tpu.memory_space<vmem>>, vector<8x128xf32>
    tpu.vector_store %arg5[%c0_16, %c0_17], %40 {strides = array<i32>} : memref<8x128xf32, #tpu.memory_space<vmem>>, vector<8x128xf32>,
    return
  }
  func.func @transform_0(%arg0: i32) -> (i32, i32) {
    %c0_i32 = arith.constant 0 : i32
    %c0_i32_0 = arith.constant 0 : i32
    %c0_i32_1 = arith.constant 0 : i32
    return %c0_i32, %c0_i32_0 : i32, i32
  }
  func.func @transform_1(%arg0: i32) -> (i32, i32) {
    %c0_i32 = arith.constant 0 : i32
    %c0_i32_0 = arith.constant 0 : i32
    return %c0_i32, %arg0 : i32, i32
  }
  func.func @transform_2(%arg0: i32) -> (i32, i32) {
    %c0_i32 = arith.constant 0 : i32
    %c0_i32_0 = arith.constant 0 : i32
    return %c0_i32, %arg0 : i32, i32
  }
  func.func @transform_3(%arg0: i32) -> (i32, i32) {
    %c0_i32 = arith.constant 0 : i32
    %c0_i32_0 = arith.constant 0 : i32
    %c0_i32_1 = arith.constant 0 : i32
    return %c0_i32, %c0_i32_0 : i32, i32
  }
  func.func @transform_4(%arg0: i32) -> (i32, i32) {
    %c0_i32 = arith.constant 0 : i32
    %c0_i32_0 = arith.constant 0 : i32
    return %c0_i32, %arg0 : i32, i32
  }
}

</mosaic_0001>

<llo_original>
// kernel: tpu_custom_call.1
$region0: #{tpu_custom_call.1}
  #allocation0 [shape = 'u32[]', space=smem, size = 0x4, offset = 0x4, fixed_abs, tag = 'smem constant byte address 0x4 - core index']
  #allocation1 [shape = 'u32[144,128]{1,0:T(1,128)}', space=vmem, size = 0x12000, scoped, tag = 'internal scratch']
  %s0 = inlined_call_operand.vmem [shape: bf16[8,128], index: 0, kind: input, shape index: {}]
  %s1 = inlined_call_operand.hbm [shape: bf16[128,128], index: 1, kind: input, shape index: {}]
  %s2 = inlined_call_operand.vmem [shape: f32[1,128], index: 2, kind: input, shape index: {}]
  %s3 = inlined_call_operand.vmem [shape: s32[8,1], index: 3, kind: input, shape index: {}]
  %s4 = inlined_call_operand.hbm [shape: f32[8,128], index: 4, kind: output, shape index: {}]
  %s5 = sld [smem:[#allocation0]]
  $region30: #{tpu_custom_call.1} parent=0
    _
  %s7 = ssub.s32 1, %s5
  %s8 = scalar_select 0, %s7, %s5
  $region1: #{tpu_custom_call.1} parent=0
    #allocation2 [shape = 'u8[32768]{0}', space=vmem, size = 0x8000, scoped, tag = 'input window, operand 1, single buffered']
    #allocation3 [shape = 's32[1]{0}', space=sflag, size = 0x4, scoped, tag = 'scoped memory for tpu_custom_call.1']
    #allocation4 [shape = 's32[1]{0}', space=sflag, size = 0x4, scoped, tag = 'scoped memory for tpu_custom_call.1']
    #allocation5 [shape = 'u8[4096]{0}', space=vmem, size = 0x1000, scoped, tag = 'output window, operand 0, single buffered']
    %9 = vsyncpa [#allocation3], 0
    %10 = vsyncpa [#allocation4], 0
    // Predicated region
    $region2: #{tpu_custom_call.1} parent=1 // pred_check
      _
    $region3: #{tpu_custom_call.1} parent=1 // pred_check_branch
      %12 = sbr.rel (0) target = $region5
    $region4: #{tpu_custom_call.1} parent=1 // pred_region
      _
    $region5: #{tpu_custom_call.1} parent=1 // pred_fallthru
      _
    // Predicated region
    $region6: #{tpu_custom_call.1} parent=1 // pred_check
      _
    $region7: #{tpu_custom_call.1} parent=1 // pred_check_branch
      %14 = sbr.rel (0) target = $region9
    $region8: #{tpu_custom_call.1} parent=1 // pred_region
      %s16 = ssub.s32 1024, 1024
      %17 = vsyncadd [#allocation3], %s16
      %s18 = sshll.u32 [#allocation2], 4
      %s19 = int_to_ptr.vmem [resolvable:$true] %s18
      %24 = dma.hbm_to_vmem [thread:$0]  %s1, 1024, %s19, [#allocation3], 64, 64, 4
    $region9: #{tpu_custom_call.1} parent=1 // pred_fallthru
      _
    // Predicated region
    $region10: #{tpu_custom_call.1} parent=1 // pred_check
      _
    $region11: #{tpu_custom_call.1} parent=1 // pred_check_branch
      %26 = sbr.rel (0) target = $region13
    $region12: #{tpu_custom_call.1} parent=1 // pred_region
      _
    $region13: #{tpu_custom_call.1} parent=1 // pred_fallthru
      _
    // Predicated region
    $region14: #{tpu_custom_call.1} parent=1 // pred_check
      _
    $region15: #{tpu_custom_call.1} parent=1 // pred_check_branch
      %28 = sbr.rel (0) target = $region17
    $region16: #{tpu_custom_call.1} parent=1 // pred_region
      _
    $region17: #{tpu_custom_call.1} parent=1 // pred_fallthru
      _
    // Predicated region
    $region18: #{tpu_custom_call.1} parent=1 // pred_check
      _
    $region19: #{tpu_custom_call.1} parent=1 // pred_check_branch
      %30 = sbr.rel (0) target = $region21
    $region20: #{tpu_custom_call.1} parent=1 // pred_region
      %31 = dma.done [#allocation3], 1024
    $region21: #{tpu_custom_call.1} parent=1 // pred_fallthru
      _
    %v33 = vld [vmem:[%s0] sm:$0xf]
    %v34 = vld [vmem:[#allocation2] sm:$0xf]
    %v35 = vld [vmem:[#allocation2 + $0x4] sm:$0xf]
    %v36 = vld [vmem:[#allocation2 + $0x8] sm:$0xf]
    %v37 = vld [vmem:[#allocation2 + $0xc] sm:$0xf]
    %v38 = vld [vmem:[#allocation2 + $0x10] sm:$0xf]
    %v39 = vld [vmem:[#allocation2 + $0x14] sm:$0xf]
    %v40 = vld [vmem:[#allocation2 + $0x18] sm:$0xf]
    %v41 = vld [vmem:[#allocation2 + $0x1c] sm:$0xf]
    %v42 = vld [vmem:[#allocation2 + $0x20] sm:$0xf]
    %v43 = vld [vmem:[#allocation2 + $0x24] sm:$0xf]
    %v44 = vld [vmem:[#allocation2 + $0x28] sm:$0xf]
    %v45 = vld [vmem:[#allocation2 + $0x2c] sm:$0xf]
    %v46 = vld [vmem:[#allocation2 + $0x30] sm:$0xf]
    %v47 = vld [vmem:[#allocation2 + $0x34] sm:$0xf]
    %v48 = vld [vmem:[#allocation2 + $0x38] sm:$0xf]
    %v49 = vld [vmem:[#allocation2 + $0x3c] sm:$0xf]
    %v66 = vunpack.c.l.b16 %v34
    %v67 = vunpack.c.l.b16 %v35
    %v68 = vunpack.c.l.b16 %v36
    %v69 = vunpack.c.l.b16 %v37
    %v70 = vunpack.c.l.b16 %v38
    %v71 = vunpack.c.l.b16 %v39
    %v72 = vunpack.c.l.b16 %v40
    %v73 = vunpack.c.l.b16 %v41
    %v74 = vunpack.c.l.b16 %v42
    %v75 = vunpack.c.l.b16 %v43
    %v76 = vunpack.c.l.b16 %v44
    %v77 = vunpack.c.l.b16 %v45
    %v78 = vunpack.c.l.b16 %v46
    %v79 = vunpack.c.l.b16 %v47
    %v80 = vunpack.c.l.b16 %v48
    %v81 = vunpack.c.l.b16 %v49
    %v82 = vpack.c.b16 %v67, %v66
    %v83 = vpack.c.b16 %v69, %v68
    %v84 = vpack.c.b16 %v71, %v70
    %v85 = vpack.c.b16 %v73, %v72
    %v86 = vpack.c.b16 %v75, %v74
    %v87 = vpack.c.b16 %v77, %v76
    %v88 = vpack.c.b16 %v79, %v78
    %v89 = vpack.c.b16 %v81, %v80
    %98 = vmatprep.subr.bf16.mxu0 0
    %99 = vmatpush1.bf16.msra.mxu0 %v82
    %100 = vmatprep.subr.bf16.mxu0 0
    %101 = vmatpush1.bf16.msra.mxu0 %v83
    %102 = vmatprep.subr.bf16.mxu0 0
    %103 = vmatpush1.bf16.msra.mxu0 %v84
    %104 = vmatprep.subr.bf16.mxu0 0
    %105 = vmatpush1.bf16.msra.mxu0 %v85
    %106 = vmatprep.subr.bf16.mxu0 0
    %107 = vmatpush1.bf16.msra.mxu0 %v86
    %108 = vmatprep.subr.bf16.mxu0 0
    %109 = vmatpush1.bf16.msra.mxu0 %v87
    %110 = vmatprep.subr.bf16.mxu0 0
    %111 = vmatpush1.bf16.msra.mxu0 %v88
    %112 = vmatprep.subr.bf16.mxu0 0
    %113 = vmatpush1.bf16.msra.mxu0 %v89
    %114 = vmatprep.subr.bf16.mxu0 0
    %115 = vmatpush1.bf16.msra.mxu0 0
    %116 = vmatprep.subr.bf16.mxu0 0
    %117 = vmatpush1.bf16.msra.mxu0 0
    %118 = vmatprep.subr.bf16.mxu0 0
    %119 = vmatpush1.bf16.msra.mxu0 0
    %120 = vmatprep.subr.bf16.mxu0 0
    %121 = vmatpush1.bf16.msra.mxu0 0
    %122 = vmatprep.subr.bf16.mxu0 0
    %123 = vmatpush1.bf16.msra.mxu0 0
    %124 = vmatprep.subr.bf16.mxu0 0
    %125 = vmatpush1.bf16.msra.mxu0 0
    %126 = vmatprep.subr.bf16.mxu0 0
    %127 = vmatpush1.bf16.msra.mxu0 0
    %128 = vmatprep.subr.bf16.mxu0 0
    %129 = vmatpush1.bf16.msra.mxu0 0
    %130 = vmatprep.mubr.bf16.mxu0 0
    %131 = vmatmul.mubr.bf16.gmra.mrb[0].mxu0 %v33
    %v132 = vpop.f32.mrb[0].mxu0
    %v133 = vadd.f32 0.0, %v132
    %v134 = vpop.f32.mrb[0].mxu0
    %v135 = vpop.f32.mrb[0].mxu0
    %v136 = vpop.f32.mrb[0].mxu0
    %137 = vdwg.mxu0
    %v138 = vld [vmem:[%s2] sm:$0x1]
    %v140 = vlaneseq
    %v141 = vshrl.u32 %v140, 7
    %v142 = vsub.s32 0, %v141
    %v143 = vrot.slane %v138, %v142
    %v145 = vmul.f32 %v133, %v143
    %s146 = smul.u32 0, 128
    %v147 = vlaneseq
    %v148 = vand.u32 %v147, 127
    %v149 = vstv %s146
    %v150 = vadd.s32 %v148, %v149
    %v151 = vld [vmem:[%s3] sm:$0xff]
    %152 = vset.pattern.permute.xlu0 0
    %153 = vperm.xlu0 %152, %v151
    %v154 = vpop.permute.xlu0 %153
    %vm155 = vcmp.eq.s32.totalorder %v150, %v154
    %v156 = vsel %vm155, 1, 0
    %v157 = vcvt.s32.f32 %v156
    %v158 = vmul.f32 %v145, %v157
    %159 = vadd.xlane.f32.xlu0 %v158
    %v160 = vpop.xlane.xlu0 %159
    %v161 = vmul.f32 %v160, 0.125
    %v162 = vmax.f32 %v161, -0.9999
    %v163 = vmin.f32 %v162, 0.9999
    %v164 = vmul.f32 %v163, %v163
    %v165 = vsub.f32 1.0, %v164
    %v166 = vmax.f32 %v165, 0.0
    %v167 = vrsqrt.pop %v166
    %v168 = vmul.f32 %v166, %v167
    %vm169 = vcmp.eq.f32.partialorder %v166, inf
    %v170 = vsel %vm169, %v166, %v168
    %vm171 = vcmp.eq.f32.partialorder %v166, 0.0
    %v172 = vand.u32 %v166, 2147483648
    %v173 = vsel %vm171, %v172, %v170
    %v174 = vmul.f32 %v163, 0.9800666
    %v175 = vmul.f32 %v173, 0.19866933
    %v176 = vsub.f32 %v174, %v175
    %v177 = vmul.f32 %v176, 8.0
    %v178 = vsub.f32 %v177, %v160
    %v179 = vmul.f32 %v178, %v157
    %v180 = vadd.f32 %v145, %v179
    %181 = vst [vmem:[#allocation5] sm:$0xff] %v180
    // Predicated region
    $region22: #{tpu_custom_call.1} parent=1 // pred_check
      _
    $region23: #{tpu_custom_call.1} parent=1 // pred_check_branch
      %183 = sbr.rel (0) target = $region25
    $region24: #{tpu_custom_call.1} parent=1 // pred_region
      %s185 = ssub.s32 128, 128
      %186 = vsyncadd [#allocation4], %s185
      %s188 = sshll.u32 [#allocation5], 4
      %s189 = int_to_ptr.vmem [resolvable:$true] %s188
      %191 = dma.vmem_to_hbm [thread:$0]  %s189, 128, %s4, [#allocation4]
    $region25: #{tpu_custom_call.1} parent=1 // pred_fallthru
      _
    // Predicated region
    $region26: #{tpu_custom_call.1} parent=1 // pred_check
      _
    $region27: #{tpu_custom_call.1} parent=1 // pred_check_branch
      %193 = sbr.rel (0) target = $region29
    $region28: #{tpu_custom_call.1} parent=1 // pred_region
      %194 = dma.done [#allocation4], 128
    $region29: #{tpu_custom_call.1} parent=1 // pred_fallthru
      _
    %195 = vsyncpa [#allocation3], 1
    %196 = vsyncpa [#allocation4], 1

// kernel: tpu_custom_call.1
$region0: #{tpu_custom_call.1}
  #allocation0 [shape = 'u32[]', space=smem, size = 0x4, offset = 0x4, fixed_abs, tag = 'smem constant byte address 0x4 - core index']
  #allocation1 [shape = 'u32[144,128]{1,0:T(1,128)}', space=vmem, size = 0x12000, scoped, tag = 'internal scratch']
  %s0 = inlined_call_operand.vmem [shape: bf16[8,128], index: 0, kind: input, shape index: {}]
  %s1 = inlined_call_operand.hbm [shape: bf16[128,128], index: 1, kind: input, shape index: {}]
  %s2 = inlined_call_operand.vmem [shape: f32[1,128], index: 2, kind: input, shape index: {}]
  %s3 = inlined_call_operand.vmem [shape: s32[8,1], index: 3, kind: input, shape index: {}]
  %s4 = inlined_call_operand.hbm [shape: f32[8,128], index: 4, kind: output, shape index: {}]
  %s5 = sld [smem:[#allocation0]]
  $region30: #{tpu_custom_call.1} parent=0
    _
  %s7 = ssub.s32 1, %s5
  %s8 = scalar_select 0, %s7, %s5
  $region1: #{tpu_custom_call.1} parent=0
    #allocation2 [shape = 'u8[32768]{0}', space=vmem, size = 0x8000, scoped, tag = 'input window, operand 1, single buffered']
    #allocation3 [shape = 's32[1]{0}', space=sflag, size = 0x4, scoped, tag = 'scoped memory for tpu_custom_call.1']
    #allocation4 [shape = 's32[1]{0}', space=sflag, size = 0x4, scoped, tag = 'scoped memory for tpu_custom_call.1']
    #allocation5 [shape = 'u8[4096]{0}', space=vmem, size = 0x1000, scoped, tag = 'output window, operand 0, single buffered']
    %9 = vsyncpa [#allocation3], 0
    %10 = vsyncpa [#allocation4], 0
    // Predicated region
    $region2: #{tpu_custom_call.1} parent=1 // pred_check
      _
    $region3: #{tpu_custom_call.1} parent=1 // pred_check_branch
      %12 = sbr.rel (0) target = $region5
    $region4: #{tpu_custom_call.1} parent=1 // pred_region
      _
    $region5: #{tpu_custom_call.1} parent=1 // pred_fallthru
      _
    // Predicated region
    $region6: #{tpu_custom_call.1} parent=1 // pred_check
      _
    $region7: #{tpu_custom_call.1} parent=1 // pred_check_branch
      %14 = sbr.rel (0) target = $region9
    $region8: #{tpu_custom_call.1} parent=1 // pred_region
      %s16 = ssub.s32 1024, 1024
      %17 = vsyncadd [#allocation3], %s16
      %s18 = sshll.u32 [#allocation2], 4
      %s19 = int_to_ptr.vmem [resolvable:$true] %s18
      %24 = dma.hbm_to_vmem [thread:$0]  %s1, 1024, %s19, [#allocation3], 64, 64, 4
    $region9: #{tpu_custom_call.1} parent=1 // pred_fallthru
      _
    // Predicated region
    $region10: #{tpu_custom_call.1} parent=1 // pred_check
      _
    $region11: #{tpu_custom_call.1} parent=1 // pred_check_branch
      %26 = sbr.rel (0) target = $region13
    $region12: #{tpu_custom_call.1} parent=1 // pred_region
      _
    $region13: #{tpu_custom_call.1} parent=1 // pred_fallthru
      _
    // Predicated region
    $region14: #{tpu_custom_call.1} parent=1 // pred_check
      _
    $region15: #{tpu_custom_call.1} parent=1 // pred_check_branch
      %28 = sbr.rel (0) target = $region17
    $region16: #{tpu_custom_call.1} parent=1 // pred_region
      _
    $region17: #{tpu_custom_call.1} parent=1 // pred_fallthru
      _
    // Predicated region
    $region18: #{tpu_custom_call.1} parent=1 // pred_check
      _
    $region19: #{tpu_custom_call.1} parent=1 // pred_check_branch
      %30 = sbr.rel (0) target = $region21
    $region20: #{tpu_custom_call.1} parent=1 // pred_region
      %31 = dma.done [#allocation3], 1024
    $region21: #{tpu_custom_call.1} parent=1 // pred_fallthru
      _
    %v33 = vld [vmem:[%s0] sm:$0xf]
    %v34 = vld [vmem:[#allocation2] sm:$0xf]
    %v35 = vld [vmem:[#allocation2 + $0x4] sm:$0xf]
    %v36 = vld [vmem:[#allocation2 + $0x8] sm:$0xf]
    %v37 = vld [vmem:[#allocation2 + $0xc] sm:$0xf]
    %v38 = vld [vmem:[#allocation2 + $0x10] sm:$0xf]
    %v39 = vld [vmem:[#allocation2 + $0x14] sm:$0xf]
    %v40 = vld [vmem:[#allocation2 + $0x18] sm:$0xf]
    %v41 = vld [vmem:[#allocation2 + $0x1c] sm:$0xf]
    %v42 = vld [vmem:[#allocation2 + $0x20] sm:$0xf]
    %v43 = vld [vmem:[#allocation2 + $0x24] sm:$0xf]
    %v44 = vld [vmem:[#allocation2 + $0x28] sm:$0xf]
    %v45 = vld [vmem:[#allocation2 + $0x2c] sm:$0xf]
    %v46 = vld [vmem:[#allocation2 + $0x30] sm:$0xf]
    %v47 = vld [vmem:[#allocation2 + $0x34] sm:$0xf]
    %v48 = vld [vmem:[#allocation2 + $0x38] sm:$0xf]
    %v49 = vld [vmem:[#allocation2 + $0x3c] sm:$0xf]
    %v66 = vunpack.c.l.b16 %v34
    %v67 = vunpack.c.l.b16 %v35
    %v68 = vunpack.c.l.b16 %v36
    %v69 = vunpack.c.l.b16 %v37
    %v70 = vunpack.c.l.b16 %v38
    %v71 = vunpack.c.l.b16 %v39
    %v72 = vunpack.c.l.b16 %v40
    %v73 = vunpack.c.l.b16 %v41
    %v74 = vunpack.c.l.b16 %v42
    %v75 = vunpack.c.l.b16 %v43
    %v76 = vunpack.c.l.b16 %v44
    %v77 = vunpack.c.l.b16 %v45
    %v78 = vunpack.c.l.b16 %v46
    %v79 = vunpack.c.l.b16 %v47
    %v80 = vunpack.c.l.b16 %v48
    %v81 = vunpack.c.l.b16 %v49
    %v82 = vpack.c.b16 %v67, %v66
    %v83 = vpack.c.b16 %v69, %v68
    %v84 = vpack.c.b16 %v71, %v70
    %v85 = vpack.c.b16 %v73, %v72
    %v86 = vpack.c.b16 %v75, %v74
    %v87 = vpack.c.b16 %v77, %v76
    %v88 = vpack.c.b16 %v79, %v78
    %v89 = vpack.c.b16 %v81, %v80
    %98 = vmatprep.subr.bf16.mxu0 0
    %99 = vmatpush1.bf16.msra.mxu0 %v82
    %100 = vmatprep.subr.bf16.mxu0 0
    %101 = vmatpush1.bf16.msra.mxu0 %v83
    %102 = vmatprep.subr.bf16.mxu0 0
    %103 = vmatpush1.bf16.msra.mxu0 %v84
    %104 = vmatprep.subr.bf16.mxu0 0
    %105 = vmatpush1.bf16.msra.mxu0 %v85
    %106 = vmatprep.subr.bf16.mxu0 0
    %107 = vmatpush1.bf16.msra.mxu0 %v86
    %108 = vmatprep.subr.bf16.mxu0 0
    %109 = vmatpush1.bf16.msra.mxu0 %v87
    %110 = vmatprep.subr.bf16.mxu0 0
    %111 = vmatpush1.bf16.msra.mxu0 %v88
    %112 = vmatprep.subr.bf16.mxu0 0
    %113 = vmatpush1.bf16.msra.mxu0 %v89
    %114 = vmatprep.subr.bf16.mxu0 0
    %115 = vmatpush1.bf16.msra.mxu0 0
    %116 = vmatprep.subr.bf16.mxu0 0
    %117 = vmatpush1.bf16.msra.mxu0 0
    %118 = vmatprep.subr.bf16.mxu0 0
    %119 = vmatpush1.bf16.msra.mxu0 0
    %120 = vmatprep.subr.bf16.mxu0 0
    %121 = vmatpush1.bf16.msra.mxu0 0
    %122 = vmatprep.subr.bf16.mxu0 0
    %123 = vmatpush1.bf16.msra.mxu0 0
    %124 = vmatprep.subr.bf16.mxu0 0
    %125 = vmatpush1.bf16.msra.mxu0 0
    %126 = vmatprep.subr.bf16.mxu0 0
    %127 = vmatpush1.bf16.msra.mxu0 0
    %128 = vmatprep.subr.bf16.mxu0 0
    %129 = vmatpush1.bf16.msra.mxu0 0
    %130 = vmatprep.mubr.bf16.mxu0 0
    %131 = vmatmul.mubr.bf16.gmra.mrb[0].mxu0 %v33
    %v132 = vpop.f32.mrb[0].mxu0
    %v133 = vadd.f32 0.0, %v132
    %v134 = vpop.f32.mrb[0].mxu0
    %v135 = vpop.f32.mrb[0].mxu0
    %v136 = vpop.f32.mrb[0].mxu0
    %137 = vdwg.mxu0
    %v138 = vld [vmem:[%s2] sm:$0x1]
    %v140 = vlaneseq
    %v141 = vshrl.u32 %v140, 7
    %v142 = vsub.s32 0, %v141
    %v143 = vrot.slane %v138, %v142
    %v145 = vmul.f32 %v133, %v143
    %s146 = smul.u32 0, 128
    %v147 = vlaneseq
    %v148 = vand.u32 %v147, 127
    %v149 = vstv %s146
    %v150 = vadd.s32 %v148, %v149
    %v151 = vld [vmem:[%s3] sm:$0xff]
    %152 = vset.pattern.permute.xlu0 0
    %153 = vperm.xlu0 %152, %v151
    %v154 = vpop.permute.xlu0 %153
    %vm155 = vcmp.eq.s32.totalorder %v150, %v154
    %v156 = vsel %vm155, 1, 0
    %v157 = vcvt.s32.f32 %v156
    %v158 = vmul.f32 %v145, %v157
    %159 = vadd.xlane.f32.xlu0 %v158
    %v160 = vpop.xlane.xlu0 %159
    %v161 = vmul.f32 %v160, 0.125
    %v162 = vmax.f32 %v161, -0.9999
    %v163 = vmin.f32 %v162, 0.9999
    %v164 = vmul.f32 %v163, %v163
    %v165 = vsub.f32 1.0, %v164
    %v166 = vmax.f32 %v165, 0.0
    %v167 = vrsqrt.pop %v166
    %v168 = vmul.f32 %v166, %v167
    %vm169 = vcmp.eq.f32.partialorder %v166, inf
    %v170 = vsel %vm169, %v166, %v168
    %vm171 = vcmp.eq.f32.partialorder %v166, 0.0
    %v172 = vand.u32 %v166, 2147483648
    %v173 = vsel %vm171, %v172, %v170
    %v174 = vmul.f32 %v163, 0.9800666
    %v175 = vmul.f32 %v173, 0.19866933
    %v176 = vsub.f32 %v174, %v175
    %v177 = vmul.f32 %v176, 8.0
    %v178 = vsub.f32 %v177, %v160
    %v179 = vmul.f32 %v178, %v157
    %v180 = vadd.f32 %v145, %v179
    %181 = vst [vmem:[#allocation5] sm:$0xff] %v180
    // Predicated region
    $region22: #{tpu_custom_call.1} parent=1 // pred_check
      _
    $region23: #{tpu_custom_call.1} parent=1 // pred_check_branch
      %183 = sbr.rel (0) target = $region25
    $region24: #{tpu_custom_call.1} parent=1 // pred_region
      %s185 = ssub.s32 128, 128
      %186 = vsyncadd [#allocation4], %s185
      %s188 = sshll.u32 [#allocation5], 4
      %s189 = int_to_ptr.vmem [resolvable:$true] %s188
      %191 = dma.vmem_to_hbm [thread:$0]  %s189, 128, %s4, [#allocation4]
    $region25: #{tpu_custom_call.1} parent=1 // pred_fallthru
      _
    // Predicated region
    $region26: #{tpu_custom_call.1} parent=1 // pred_check
      _
    $region27: #{tpu_custom_call.1} parent=1 // pred_check_branch
      %193 = sbr.rel (0) target = $region29
    $region28: #{tpu_custom_call.1} parent=1 // pred_region
      %194 = dma.done [#allocation4], 128
    $region29: #{tpu_custom_call.1} parent=1 // pred_fallthru
      _
    %195 = vsyncpa [#allocation3], 1
    %196 = vsyncpa [#allocation4], 1

</llo_original>
